<compile_context>
chip_gen: v5e
topology: v5e:2x2
jax: 0.10.0
libtpu: 0.0.40
codegen_flags: <defaults>
</compile_context>

<pallas_src>
import numpy as np
import jax
import jax.numpy as jnp
from jax.experimental import pallas as pl
from jax.experimental.pallas import tpu as pltpu

IN_DIM = 4        # real input features (CartPole state)
HID = 128         # hidden width (lane aligned)
OUT_DIM = 2       # actions

K1 = 8            # padded input features: 4 state + 1 bias-one + 3 zero
OUT_ROWS = 8      # sublane-padded output rows; rows 0,1 hold the probabilities
TB_MAX = 1024     # max batch-tile width (lanes) per grid step


def policy_kernel(x_ref, w1_ref, w2d_ref, b2d_ref, o_ref):
    # x_ref:   (K1, TB)      rows 0..3 = state.T, row 4 = 1.0 (bias feature)
    # w1_ref:  (HID, K1)     cols 0..3 = fc1 weight (transposed), col 4 = fc1 bias
    # w2d_ref: (8, HID)      every row = w2[:,0] - w2[:,1]
    # b2d_ref: (1,) in SMEM  b2[0] - b2[1]
    # o_ref:   (8, TB)       row 0 = P(a=0), row 1 = P(a=1) = 1 - P(a=0)
    x = x_ref[...]

    # fc1 (+ folded bias) + ReLU: one small MXU pass, f32 accumulate.
    h = jnp.dot(w1_ref[...], x, preferred_element_type=jnp.float32)   # (HID, TB)
    h = jnp.maximum(h, 0.0)

    # fc2 fused with 2-way softmax: z = l0 - l1, then a numerically-safe sigmoid.
    # Reduction over HID is done on the (otherwise idle) MXU; all 8 rows of z
    # are identical since w2d rows are replicated.
    z = jnp.dot(w2d_ref[...], h, preferred_element_type=jnp.float32)  # (8, TB)
    z = z + b2d_ref[0]

    ez = jnp.exp(-jnp.abs(z))                 # in (0, 1], no overflow possible
    p_pos = 1.0 / (1.0 + ez)                  # sigmoid(|z|)
    p0 = jnp.where(z >= 0.0, p_pos, 1.0 - p_pos)   # sigmoid(z) = P(action 0)

    # Row 0 -> p0, rows 1..7 -> 1 - p0 (row 1 is the real P(action 1); the
    # remaining rows are padding that the host slices away).  Exact p0+p1 == 1.
    sub = jax.lax.broadcasted_iota(jnp.int32, p0.shape, 0)
    o_ref[...] = jnp.where(sub == 0, p0, 1.0 - p0)


def prepare_params(w1, b1, w2, b2):
    """One-time (per optimizer step) packing of the weights into TPU tiles."""
    # fc1, transposed, with the bias folded in as an extra input feature.
    w1ext = jnp.zeros((HID, K1), jnp.float32)
    w1ext = w1ext.at[:, :IN_DIM].set(w1.astype(jnp.float32).T)
    w1ext = w1ext.at[:, IN_DIM].set(b1.astype(jnp.float32))
    # fc2 reduced to a single difference row, replicated across 8 sublanes.
    w2diff = (w2[:, 0] - w2[:, 1]).astype(jnp.float32)                 # (HID,)
    w2d = jnp.broadcast_to(w2diff[None, :], (OUT_ROWS, HID)) + 0.0     # (8, HID)
    b2d = jnp.asarray([b2[0] - b2[1]], jnp.float32)                    # (1,) -> SMEM
    return w1ext, w2d, b2d


def _choose_tb(B):
    """Largest tile <= TB_MAX, multiple of 128, but >= 2 tiles for moderate B
    so both v7x TensorCores get work (no-op on single-core v5e/v6e)."""
    half = pl.cdiv(B, 2)
    tb = ((half + 127) // 128) * 128
    return max(128, min(TB_MAX, tb))


@jax.jit
def policy_forward(x, w1ext, w2d, b2d):
    """x: (4,) single state or (B, 4) batch of states.
    Returns (2,) or (B, 2) action probabilities."""
    single = x.ndim == 1
    xb = x[None, :] if single else x
    B = xb.shape[0]
    TB = _choose_tb(B)
    nb = pl.cdiv(B, TB)
    b_pad = nb * TB

    # Feature-major, padded input: (K1, b_pad). Padded columns get state=0 and
    # the bias-one feature -> finite probabilities that are sliced away.
    xp = jnp.zeros((K1, b_pad), jnp.float32)
    xp = xp.at[IN_DIM, :].set(1.0)
    xp = xp.at[:IN_DIM, :B].set(xb.astype(jnp.float32).T)

    out = pl.pallas_call(
        policy_kernel,
        out_shape=jax.ShapeDtypeStruct((OUT_ROWS, b_pad), jnp.float32),
        grid=(nb,),
        in_specs=[
            pl.BlockSpec((K1, TB), lambda i: (0, i)),
            pl.BlockSpec((HID, K1), lambda i: (0, 0)),
            pl.BlockSpec((OUT_ROWS, HID), lambda i: (0, 0)),
            pl.BlockSpec(memory_space=pltpu.MemorySpace.SMEM),
        ],
        out_specs=pl.BlockSpec((OUT_ROWS, TB), lambda i: (0, i)),
        compiler_params=pltpu.CompilerParams(
            dimension_semantics=("parallel",)),
    )(xp, w1ext, w2d, b2d)

    probs = out[:OUT_DIM, :B].T            # (B, 2)
    return probs[0] if single else probs


def init_params(key):
    """PyTorch-style nn.Linear init: U(-1/sqrt(fan_in), 1/sqrt(fan_in))."""
    k1, k2, k3, k4 = jax.random.split(key, 4)
    bound1 = 1.0 / np.sqrt(IN_DIM)
    bound2 = 1.0 / np.sqrt(HID)
    w1 = jax.random.uniform(k1, (IN_DIM, HID), jnp.float32, -bound1, bound1)
    b1 = jax.random.uniform(k2, (HID,), jnp.float32, -bound1, bound1)
    w2 = jax.random.uniform(k3, (HID, OUT_DIM), jnp.float32, -bound2, bound2)
    b2 = jax.random.uniform(k4, (OUT_DIM,), jnp.float32, -bound2, bound2)
    return w1, b1, w2, b2


def reference_forward(x, w1, b1, w2, b2):
    h = jnp.maximum(x @ w1 + b1, 0.0)
    logits = h @ w2 + b2
    return jax.nn.softmax(logits, axis=0)   # matches F.softmax(..., dim=0) on (2,)


# TODO(synk): the Adam optimizer / train_net() REINFORCE update is host-side
# training logic, not part of the forward pass, and is not translated here.

if __name__ == "__main__":
    key = jax.random.PRNGKey(0)
    pkey, xkey = jax.random.split(key)
    w1, b1, w2, b2 = init_params(pkey)
    w1ext, w2d, b2d = prepare_params(w1, b1, w2, b2)   # hoisted: once per update

    # 1) single CartPole-like state, the original module usage.
    x1 = jax.random.normal(xkey, (IN_DIM,), jnp.float32)
    p1 = jax.block_until_ready(policy_forward(x1, w1ext, w2d, b2d))
    ref1 = reference_forward(x1, w1, b1, w2, b2)
    np.testing.assert_allclose(np.asarray(p1), np.asarray(ref1),
                               rtol=1e-5, atol=1e-6)
    assert abs(float(jnp.sum(p1)) - 1.0) < 1e-6

    # 2) batched states: 2 grid tiles of 128 -> both v7x TensorCores busy.
    B = 256
    xb = jax.random.normal(jax.random.PRNGKey(1), (B, IN_DIM), jnp.float32)
    pb = jax.block_until_ready(policy_forward(xb, w1ext, w2d, b2d))
    refb = jax.vmap(lambda s: reference_forward(s, w1, b1, w2, b2))(xb)
    np.testing.assert_allclose(np.asarray(pb), np.asarray(refb),
                               rtol=1e-5, atol=1e-6)
    assert np.allclose(np.asarray(pb).sum(-1), 1.0, atol=1e-6)

    # 3) odd batch size exercising the padded tail columns.
    B3 = 37
    x3 = jax.random.normal(jax.random.PRNGKey(2), (B3, IN_DIM), jnp.float32)
    p3 = jax.block_until_ready(policy_forward(x3, w1ext, w2d, b2d))
    ref3 = jax.vmap(lambda s: reference_forward(s, w1, b1, w2, b2))(x3)
    np.testing.assert_allclose(np.asarray(p3), np.asarray(ref3),
                               rtol=1e-5, atol=1e-6)

    print("KERNEL_OK")
</pallas_src>

<mosaic_0001>
module attributes {stable_mosaic.version = 11 : i64} {
  func.func @policy_kernel(%arg0: i32, %arg1: memref<8x128xf32, #tpu.memory_space<vmem>>, %arg2: memref<128x8xf32, #tpu.memory_space<vmem>>, %arg3: memref<8x128xf32, #tpu.memory_space<vmem>>, %arg4: memref<1xf32, #tpu.memory_space<smem>>, %arg5: memref<8x128xf32, #tpu.memory_space<vmem>>) attributes {dimension_semantics = [#tpu.dimension_semantics<parallel>], iteration_bounds = array<i64: 1>, scalar_prefetch = 0 : i64, scratch_operands = 0 : i64, tpu.core_type = #tpu.core_type<tc>, window_params = [{transform_indices = @transform_0, window_bounds = array<i64: 8, 128>}, {pipeline_mode = #tpu.pipeline_mode<synchronous>, transform_indices = @transform_1, window_bounds = array<i64: 128, 8>}, {pipeline_mode = #tpu.pipeline_mode<synchronous>, transform_indices = @transform_2, window_bounds = array<i64: 8, 128>}, {transform_indices = @transform_3, window_bounds = array<i64: 1>}, {transform_indices = @transform_4, window_bounds = array<i64: 8, 128>}]} {
    %c0 = arith.constant 0 : index
    %c0_0 = arith.constant 0 : index
    %0 = vector.load %arg1[%c0, %c0_0] : memref<8x128xf32, #tpu.memory_space<vmem>>, vector<8x128xf32>
    %c0_1 = arith.constant 0 : index
    %c0_2 = arith.constant 0 : index
    %1 = vector.load %arg2[%c0_1, %c0_2] : memref<128x8xf32, #tpu.memory_space<vmem>>, vector<128x8xf32>
    %cst = arith.constant dense<0.000000e+00> : vector<128x128xf32>
    %2 = tpu.matmul %1, %0, %cst {dimension_numbers = #tpu.dot_dimension_numbers<[1], [0], [0], [1], [0, 0, 1, 1], [], []>} : vector<128x8xf32>, vector<8x128xf32>, vector<128x128xf32> -> vector<128x128xf32>
    %cst_3 = arith.constant 0.000000e+00 : f32
    %3 = vector.broadcast %cst_3 : f32 to vector<128x128xf32>
    %4 = arith.maximumf %2, %3 : vector<128x128xf32>
    %c0_4 = arith.constant 0 : index
    %c0_5 = arith.constant 0 : index
    %5 = vector.load %arg3[%c0_4, %c0_5] : memref<8x128xf32, #tpu.memory_space<vmem>>, vector<8x128xf32>
    %cst_6 = arith.constant dense<0.000000e+00> : vector<8x128xf32>
    %6 = tpu.matmul %5, %4, %cst_6 {dimension_numbers = #tpu.dot_dimension_numbers<[1], [0], [0], [1], [0, 0, 1, 1], [], []>} : vector<8x128xf32>, vector<128x128xf32>, vector<8x128xf32> -> vector<8x128xf32>
    %c0_7 = arith.constant 0 : index
    %7 = memref.load %arg4[%c0_7] : memref<1xf32, #tpu.memory_space<smem>>
    %8 = vector.broadcast %7 : f32 to vector<8x128xf32>
    %9 = arith.addf %6, %8 : vector<8x128xf32>
    %10 = math.absf %9 : vector<8x128xf32>
    %cst_8 = arith.constant 0.000000e+00 : f32
    %11 = vector.broadcast %cst_8 : f32 to vector<8x128xf32>
    %12 = arith.subf %11, %10 : vector<8x128xf32>
    %13 = math.exp %12 : vector<8x128xf32>
    %cst_9 = arith.constant 1.000000e+00 : f32
    %14 = vector.broadcast %cst_9 : f32 to vector<8x128xf32>
    %15 = arith.addf %14, %13 : vector<8x128xf32>
    %cst_10 = arith.constant 1.000000e+00 : f32
    %16 = vector.broadcast %cst_10 : f32 to vector<8x128xf32>
    %17 = arith.divf %16, %15 : vector<8x128xf32>
    %cst_11 = arith.constant 0.000000e+00 : f32
    %18 = vector.broadcast %cst_11 : f32 to vector<8x128xf32>
    %19 = arith.cmpf oge, %9, %18 : vector<8x128xf32>
    %cst_12 = arith.constant 1.000000e+00 : f32
    %20 = vector.broadcast %cst_12 : f32 to vector<8x128xf32>
    %21 = arith.subf %20, %17 : vector<8x128xf32>
    %22 = arith.select %19, %17, %21 : vector<8x128xi1>, vector<8x128xf32>
    %23 = tpu.iota {dimensions = array<i32: 0>} : vector<8x128xi32>
    %c0_i32 = arith.constant 0 : i32
    %24 = vector.broadcast %c0_i32 : i32 to vector<8x128xi32>
    %25 = arith.cmpi eq, %23, %24 : vector<8x128xi32>
    %cst_13 = arith.constant 1.000000e+00 : f32
    %26 = vector.broadcast %cst_13 : f32 to vector<8x128xf32>
    %27 = arith.subf %26, %22 : vector<8x128xf32>
    %28 = arith.select %25, %22, %27 : vector<8x128xi1>, vector<8x128xf32>
    %c0_14 = arith.constant 0 : index
    %c0_15 = arith.constant 0 : index
    %29 = vector.load %arg5[%c0_14, %c0_15] : memref<8x128xf32, #tpu.memory_space<vmem>>, vector<8x128xf32>
    tpu.vector_store %arg5[%c0_14, %c0_15], %28 {strides = array<i32>} : memref<8x128xf32, #tpu.memory_space<vmem>>, vector<8x128xf32>,
    return
  }
  func.func @transform_0(%arg0: i32) -> (i32, i32) {
    %c0_i32 = arith.constant 0 : i32
    %c0_i32_0 = arith.constant 0 : i32
    return %c0_i32, %arg0 : i32, i32
  }
  func.func @transform_1(%arg0: i32) -> (i32, i32) {
    %c0_i32 = arith.constant 0 : i32
    %c0_i32_0 = arith.constant 0 : i32
    %c0_i32_1 = arith.constant 0 : i32
    return %c0_i32, %c0_i32_0 : i32, i32
  }
  func.func @transform_2(%arg0: i32) -> (i32, i32) {
    %c0_i32 = arith.constant 0 : i32
    %c0_i32_0 = arith.constant 0 : i32
    %c0_i32_1 = arith.constant 0 : i32
    return %c0_i32, %c0_i32_0 : i32, i32
  }
  func.func @transform_3(%arg0: i32) -> i32 {
    %c0_i32 = arith.constant 0 : i32
    %c0_i32_0 = arith.constant 0 : i32
    return %c0_i32 : i32
  }
  func.func @transform_4(%arg0: i32) -> (i32, i32) {
    %c0_i32 = arith.constant 0 : i32
    %c0_i32_0 = arith.constant 0 : i32
    return %c0_i32, %arg0 : i32, i32
  }
}

</mosaic_0001>

<llo_original>
// kernel: policy_forward.1
$region0: #{policy_forward.1}
  #allocation0 [shape = 'u32[]', space=smem, size = 0x4, offset = 0x4, fixed_abs, tag = 'smem constant byte address 0x4 - core index']
  #allocation1 [shape = 'u32[72,128]{1,0:T(1,128)}', space=vmem, size = 0x9000, scoped, tag = 'internal scratch']
  #allocation2 [shape = 'f32[1]{0:T(128)S(6)}', space=smem, size = 0x200, scoped, tag = 'scoped memory for policy_forward.1']
  %s0 = inlined_call_operand.vmem [shape: f32[8,128], index: 0, kind: input, shape index: {}]
  %s1 = inlined_call_operand.vmem [shape: f32[128,8], index: 1, kind: input, shape index: {}]
  %s2 = inlined_call_operand.vmem [shape: f32[8,128], index: 2, kind: input, shape index: {}]
  %s3 = inlined_call_operand.<no memory space> [shape: f32[1], index: 3, kind: input, shape index: {}]
  %s4 = inlined_call_operand.vmem [shape: f32[8,128], index: 4, kind: output, shape index: {}]
  %s5 = sld [smem:[#allocation0]]
  $region26: #{policy_forward.1} parent=0
    _
  %s7 = ssub.s32 1, %s5
  %s8 = scalar_select 0, %s7, %s5
  %9 = sst [smem:[#allocation2]] %s3
  // Predicated region
  $region2: #{policy_forward.1} parent=0 // pred_check
    _
  $region3: #{policy_forward.1} parent=0 // pred_check_branch
    %11 = sbr.rel (0) target = $region5
  $region4: #{policy_forward.1} parent=0 // pred_region
    _
  $region5: #{policy_forward.1} parent=0 // pred_fallthru
    _
  // Predicated region
  $region6: #{policy_forward.1} parent=0 // pred_check
    _
  $region7: #{policy_forward.1} parent=0 // pred_check_branch
    %13 = sbr.rel (0) target = $region9
  $region8: #{policy_forward.1} parent=0 // pred_region
    _
  $region9: #{policy_forward.1} parent=0 // pred_fallthru
    _
  // Predicated region
  $region10: #{policy_forward.1} parent=0 // pred_check
    _
  $region11: #{policy_forward.1} parent=0 // pred_check_branch
    %15 = sbr.rel (0) target = $region13
  $region12: #{policy_forward.1} parent=0 // pred_region
    _
  $region13: #{policy_forward.1} parent=0 // pred_fallthru
    _
  // Predicated region
  $region14: #{policy_forward.1} parent=0 // pred_check
    _
  $region15: #{policy_forward.1} parent=0 // pred_check_branch
    %17 = sbr.rel (0) target = $region17
  $region16: #{policy_forward.1} parent=0 // pred_region
    _
  $region17: #{policy_forward.1} parent=0 // pred_fallthru
    _
  %v18 = vld [vmem:[%s0] sm:$0xff]
  %v19 = vld [vmem:[%s1] sm:$0xff]
  %v20 = vld [vmem:[%s1 + $0x8] sm:$0xff]
  %v21 = vld [vmem:[%s1 + $0x10] sm:$0xff]
  %v22 = vld [vmem:[%s1 + $0x18] sm:$0xff]
  %v23 = vld [vmem:[%s1 + $0x20] sm:$0xff]
  %v24 = vld [vmem:[%s1 + $0x28] sm:$0xff]
  %v25 = vld [vmem:[%s1 + $0x30] sm:$0xff]
  %v26 = vld [vmem:[%s1 + $0x38] sm:$0xff]
  %v27 = vld [vmem:[%s1 + $0x40] sm:$0xff]
  %v28 = vld [vmem:[%s1 + $0x48] sm:$0xff]
  %v29 = vld [vmem:[%s1 + $0x50] sm:$0xff]
  %v30 = vld [vmem:[%s1 + $0x58] sm:$0xff]
  %v31 = vld [vmem:[%s1 + $0x60] sm:$0xff]
  %v32 = vld [vmem:[%s1 + $0x68] sm:$0xff]
  %v33 = vld [vmem:[%s1 + $0x70] sm:$0xff]
  %v34 = vld [vmem:[%s1 + $0x78] sm:$0xff]
  %vm35 = vcmask 64512
  %v37 = vsel %vm35, %v19, 0
  %v40 = vsel %vm35, %v20, 0
  %v43 = vsel %vm35, %v21, 0
  %v46 = vsel %vm35, %v22, 0
  %v49 = vsel %vm35, %v23, 0
  %v52 = vsel %vm35, %v24, 0
  %v55 = vsel %vm35, %v25, 0
  %v58 = vsel %vm35, %v26, 0
  %v61 = vsel %vm35, %v27, 0
  %v64 = vsel %vm35, %v28, 0
  %v67 = vsel %vm35, %v29, 0
  %v70 = vsel %vm35, %v30, 0
  %v73 = vsel %vm35, %v31, 0
  %v76 = vsel %vm35, %v32, 0
  %v79 = vsel %vm35, %v33, 0
  %v82 = vsel %vm35, %v34, 0
  %84 = vmatpush.msra.mxu0 0.0
  %85 = vmatpush.msra.mxu0 0.0
  %86 = vmatpush.msra.mxu0 0.0
  %87 = vmatpush.msra.mxu0 0.0
  %88 = vmatpush.msra.mxu0 0.0
  %89 = vmatpush.msra.mxu0 0.0
  %90 = vmatpush.msra.mxu0 0.0
  %91 = vmatpush.msra.mxu0 0.0
  %92 = vmatpush.msra.mxu0 0.0
  %93 = vmatpush.msra.mxu0 0.0
  %94 = vmatpush.msra.mxu0 0.0
  %95 = vmatpush.msra.mxu0 0.0
  %96 = vmatpush.msra.mxu0 0.0
  %97 = vmatpush.msra.mxu0 0.0
  %98 = vmatpush.msra.mxu0 0.0
  %99 = vmatpush.msra.mxu0 %v18
  %100 = vmatmul.f32.gmra.mxu0 %v37
  %v101 = vpop.f32.mrf.mxu0
  %v102 = vadd.f32 0.0, %v101
  %103 = vmatmul.f32.gmra.mxu0 %v40
  %v104 = vpop.f32.mrf.mxu0
  %v105 = vadd.f32 0.0, %v104
  %106 = vmatmul.f32.gmra.mxu0 %v43
  %v107 = vpop.f32.mrf.mxu0
  %v108 = vadd.f32 0.0, %v107
  %109 = vmatmul.f32.gmra.mxu0 %v46
  %v110 = vpop.f32.mrf.mxu0
  %v111 = vadd.f32 0.0, %v110
  %112 = vmatmul.f32.gmra.mxu0 %v49
  %v113 = vpop.f32.mrf.mxu0
  %v114 = vadd.f32 0.0, %v113
  %115 = vmatmul.f32.gmra.mxu0 %v52
  %v116 = vpop.f32.mrf.mxu0
  %v117 = vadd.f32 0.0, %v116
  %118 = vmatmul.f32.gmra.mxu0 %v55
  %v119 = vpop.f32.mrf.mxu0
  %v120 = vadd.f32 0.0, %v119
  %121 = vmatmul.f32.gmra.mxu0 %v58
  %v122 = vpop.f32.mrf.mxu0
  %v123 = vadd.f32 0.0, %v122
  %124 = vmatmul.f32.gmra.mxu0 %v61
  %v125 = vpop.f32.mrf.mxu0
  %v126 = vadd.f32 0.0, %v125
  %127 = vmatmul.f32.gmra.mxu0 %v64
  %v128 = vpop.f32.mrf.mxu0
  %v129 = vadd.f32 0.0, %v128
  %130 = vmatmul.f32.gmra.mxu0 %v67
  %v131 = vpop.f32.mrf.mxu0
  %v132 = vadd.f32 0.0, %v131
  %133 = vmatmul.f32.gmra.mxu0 %v70
  %v134 = vpop.f32.mrf.mxu0
  %v135 = vadd.f32 0.0, %v134
  %136 = vmatmul.f32.gmra.mxu0 %v73
  %v137 = vpop.f32.mrf.mxu0
  %v138 = vadd.f32 0.0, %v137
  %139 = vmatmul.f32.gmra.mxu0 %v76
  %v140 = vpop.f32.mrf.mxu0
  %v141 = vadd.f32 0.0, %v140
  %142 = vmatmul.f32.gmra.mxu0 %v79
  %v143 = vpop.f32.mrf.mxu0
  %v144 = vadd.f32 0.0, %v143
  %145 = vmatmul.f32.gmra.mxu0 %v82
  %v146 = vpop.f32.mrf.mxu0
  %v147 = vadd.f32 0.0, %v146
  %148 = vdwg.mxu0
  %v149 = vmax.f32 %v102, 0.0
  %v150 = vmax.f32 %v105, 0.0
  %v151 = vmax.f32 %v108, 0.0
  %v152 = vmax.f32 %v111, 0.0
  %v153 = vmax.f32 %v114, 0.0
  %v154 = vmax.f32 %v117, 0.0
  %v155 = vmax.f32 %v120, 0.0
  %v156 = vmax.f32 %v123, 0.0
  %v157 = vmax.f32 %v126, 0.0
  %v158 = vmax.f32 %v129, 0.0
  %v159 = vmax.f32 %v132, 0.0
  %v160 = vmax.f32 %v135, 0.0
  %v161 = vmax.f32 %v138, 0.0
  %v162 = vmax.f32 %v141, 0.0
  %v163 = vmax.f32 %v144, 0.0
  %v164 = vmax.f32 %v147, 0.0
  %v165 = vld [vmem:[%s2] sm:$0xff]
  %s166 = sld [smem:[#allocation2]]
  %v167 = vstv %s166
  %168 = vmatpush.msra.mxu0 %v164
  %169 = vmatpush.msra.mxu0 %v163
  %170 = vmatpush.msra.mxu0 %v162
  %171 = vmatpush.msra.mxu0 %v161
  %172 = vmatpush.msra.mxu0 %v160
  %173 = vmatpush.msra.mxu0 %v159
  %174 = vmatpush.msra.mxu0 %v158
  %175 = vmatpush.msra.mxu0 %v157
  %176 = vmatpush.msra.mxu0 %v156
  %177 = vmatpush.msra.mxu0 %v155
  %178 = vmatpush.msra.mxu0 %v154
  %179 = vmatpush.msra.mxu0 %v153
  %180 = vmatpush.msra.mxu0 %v152
  %181 = vmatpush.msra.mxu0 %v151
  %182 = vmatpush.msra.mxu0 %v150
  %183 = vmatpush.msra.mxu0 %v149
  %184 = vmatmul.f32.gmra.mxu0 %v165
  %v185 = vpop.f32.mrf.mxu0
  %v186 = vadd.f32 %v167, %v185
  %187 = vdwg.mxu0
  %v188 = vand.u32 2147483647, %v186
  %v189 = vsub.f32 0.0, %v188
  %v190 = vmul.f32 %v189, 1.442695
  %v191 = vpow.pop %v190
  %v192 = vadd.f32 %v191, 1.0
  %v193 = vrcp.pop %v192
  %v194 = vmul.f32 %v192, %v193
  %v195 = vsub.f32 1.0, %v194
  %v196 = vmul.f32 %v193, %v195
  %v197 = vadd.f32 %v193, %v196
  %vm198 = vweird.f32 %v192
  %vm199 = vweird.f32 %v193
  %vm200 = vmor %vm198, %vm199
  %v201 = vsel %vm200, %v193, %v197
  %v202 = vand.u32 2147483647, %v192
  %vm203 = vcmp.eq.f32.partialorder %v202, 8.507059e+37
  %v204 = vand.u32 %v192, 2147483648
  %v205 = vor.u32 1.1754944e-38, %v204
  %v206 = vsel %vm203, %v205, %v201
  %v207 = vmul.f32 1.0, %v206
  %vm208 = vcmp.ge.f32.partialorder %v186, 0.0
  %v209 = vsub.f32 1.0, %v207
  %v210 = vsel %vm208, %v207, %v209
  %v211 = vlaneseq
  %v212 = vshrl.u32 %v211, 7
  %vm213 = vcmp.eq.s32.totalorder %v212, 0
  %v214 = vsub.f32 1.0, %v210
  %v215 = vsel %vm213, %v210, %v214
  %216 = vst [vmem:[%s4] sm:$0xff] %v215
  // Predicated region
  $region18: #{policy_forward.1} parent=0 // pred_check
    _
  $region19: #{policy_forward.1} parent=0 // pred_check_branch
    %218 = sbr.rel (0) target = $region21
  $region20: #{policy_forward.1} parent=0 // pred_region
    _
  $region21: #{policy_forward.1} parent=0 // pred_fallthru
    _
  // Predicated region
  $region22: #{policy_forward.1} parent=0 // pred_check
    _
  $region23: #{policy_forward.1} parent=0 // pred_check_branch
    %220 = sbr.rel (0) target = $region25
  $region24: #{policy_forward.1} parent=0 // pred_region
    _
  $region25: #{policy_forward.1} parent=0 // pred_fallthru
    _

</llo_original>
